<compile_context>
chip_gen: v7x
topology: tpu7x:2x2x1
jax: 0.10.0
libtpu: 0.0.40
codegen_flags: <defaults>
</compile_context>

<pallas_src>
import numpy as np
import jax
import jax.numpy as jnp
from jax import lax
from jax.experimental import pallas as pl
from jax.experimental.pallas import tpu as pltpu

# ----------------------------- module config --------------------------------
D_MODEL_F = 4
FINE_WINDOW_SIZE = 8                  # W (fine window side)
COMPACT_DIMS = (8, 8)
MLP_DIMS = (32, 32, 2)

W = FINE_WINDOW_SIZE
WW = W * W
C_IN = 2 * D_MODEL_F                  # channels after cat([feat0, feat1], dim=1)
C1, C2 = COMPACT_DIMS
HO1 = (W + 2 - 3) // 2 + 1            # conv3x3 stride-2 pad-1 output side (4)
HO2 = (HO1 + 2 - 3) // 2 + 1          # (2)
FEAT_DIM = HO2 * HO2 * C2             # == round(W/4 + 0.5)**2 * COMPACT_DIMS[-1]
H1, H2, REG_OUT = MLP_DIMS
assert FEAT_DIM == round(W / 4 + 0.5) ** 2 * C2

WWC = WW * D_MODEL_F                  # 256 : per-patch flattened feature width
NP = HO1 * HO1 * C1                   # 128 : hidden width after folded conv1
assert WWC % 128 == 0 and NP == 128
assert 2 * H1 <= NP and 2 * H2 <= NP and REG_OUT + 1 <= NP


def _round_up(x, n):
    return ((x + n - 1) // n) * n


def _leaky(v):                         # nn.LeakyReLU() default slope
    return jnp.where(v > 0, v, 0.01 * v)


# ------------------------------ fused kernel --------------------------------
def _fused_kernel(x0_ref, x1_ref, wa_ref, wb_ref, bnb_ref,
                  wf1_ref, w2_ref, w3_ref, osc_ref, obi_ref, out_ref):
    # x0/x1      : (TM, 256)   flattened fine-window features (feat0 / feat1)
    # wa/wb      : (256, 128)  conv1(pad,stride2,im2col) + BN scale, per half
    # bnb        : (1, 128)    folded BN bias, tiled per output position
    # wf1        : (128, 128)  conv2 + CHW-flatten + Linear1 of both heads (64 live cols)
    # w2         : (128, 128)  block-diag(wr2, wc2), 64 live rows/cols
    # w3         : (128, 128)  block-diag(wr3, 0.5*wc3), 3 live cols
    # osc/obi    : (1, 128)    per-lane affine turning tanh(z/2) into sigmoid(z) on the cls lane
    # out        : (TM, 128)   cols 0:2 tanh(reg), col 2 sigmoid(cls), rest 0
    cd = wa_ref.dtype                                     # compute dtype (f32 or bf16)

    h = jnp.dot(x0_ref[...], wa_ref[...], preferred_element_type=jnp.float32)
    h = h + jnp.dot(x1_ref[...], wb_ref[...], preferred_element_type=jnp.float32)
    h = jnp.maximum(h + bnb_ref[...], 0.0)                # BN bias + ReLU(True)

    h = _leaky(jnp.dot(h.astype(cd), wf1_ref[...], preferred_element_type=jnp.float32))
    h = _leaky(jnp.dot(h.astype(cd), w2_ref[...], preferred_element_type=jnp.float32))
    o = jnp.dot(h.astype(cd), w3_ref[...], preferred_element_type=jnp.float32)

    # single EUP pass: tanh on reg lanes; cls lane carries z/2, and
    # 0.5*(1 + tanh(z/2)) == sigmoid(z) is finished by the per-lane affine.
    t = jnp.tanh(o)
    out_ref[...] = t * osc_ref[...] + obi_ref[...]


# ------------------------------- wrapper ------------------------------------
def fine_matching_feat_reg_cls(feat_f0, feat_f1, params, *, tm_max=1024):
    """FineMatching matching step for matching_type='feat_reg_cls'.

    feat_f0, feat_f1: [M, WW, C]  (exactly what FineMatching.forward receives).
    Returns (coords_normalized [M, REG_OUT], prob_f [M, 1]).
    """
    assert tm_max % 8 == 0
    m = feat_f0.shape[0]
    if m == 0:   # FineMatching handles M==0 on the host (inference only)
        return (jnp.zeros((0, REG_OUT), jnp.float32), jnp.zeros((0, 1), jnp.float32))

    cd = params["wa"].dtype
    # 'n (h w) c -> n c h w' + NCHW conv == channels-last conv on this zero-copy
    # reshape; the (h*W+w)*C + c flatten order is baked into wa/wb.
    x0 = feat_f0.reshape(m, WWC).astype(cd)
    x1 = feat_f1.reshape(m, WWC).astype(cd)

    tm = min(tm_max, _round_up(m, 8))          # 8-row-aligned M tile
    m_pad = _round_up(m, tm)
    if m_pad != m:
        x0 = jnp.pad(x0, ((0, m_pad - m), (0, 0)))
        x1 = jnp.pad(x1, ((0, m_pad - m), (0, 0)))
    n_tiles = pl.cdiv(m_pad, tm)

    feat_spec = pl.BlockSpec((tm, WWC), lambda i: (i, 0))
    res = lambda shape: pl.BlockSpec(shape, lambda i: (0, 0))   # resident weights

    out = pl.pallas_call(
        _fused_kernel,
        out_shape=jax.ShapeDtypeStruct((m_pad, NP), jnp.float32),
        grid=(n_tiles,),
        in_specs=[feat_spec, feat_spec,
                  res((WWC, NP)), res((WWC, NP)), res((1, NP)),
                  res((NP, NP)), res((NP, NP)), res((NP, NP)),
                  res((1, NP)), res((1, NP))],
        out_specs=pl.BlockSpec((tm, NP), lambda i: (i, 0)),
        compiler_params=pltpu.CompilerParams(
            dimension_semantics=("parallel",)),    # v7x: split M tiles across 2 TCs
    )(x0, x1, params["wa"], params["wb"], params["bn_bias"],
      params["wf1"], params["w2"], params["w3"],
      params["out_scale"], params["out_bias"])

    return out[:m, :REG_OUT], out[:m, REG_OUT:REG_OUT + 1]


# ---------------------------- parameter folding -----------------------------
def prepare_params(w1_hwio, w2_hwio, gamma, beta, r_mean, r_var,
                   wr1, wr2, wr3, wc1, wc2, wc3, *, compute_dtype=jnp.float32):
    """Fold conv1+BN, conv2 and the reg/cls heads into dense, 128-padded weights."""
    gamma = np.asarray(gamma, np.float32)
    beta = np.asarray(beta, np.float32)
    r_mean = np.asarray(r_mean, np.float32)
    r_var = np.asarray(r_var, np.float32)
    inv_std = 1.0 / np.sqrt(r_var + 1e-5)
    scale = gamma * inv_std
    bias_c = beta - r_mean * scale

    # --- conv1 (pad=1, stride=2) + BN scale as two dense (256,128) matrices ---
    # output column (oi*HO1 + oj)*C1 + oc ; input row (i*W + j)*D_MODEL_F + c
    w1 = np.asarray(w1_hwio, np.float32) * scale[None, None, None, :]
    wa = np.zeros((WWC, NP), np.float32)     # feat0 half
    wb = np.zeros((WWC, NP), np.float32)     # feat1 half
    for oi in range(HO1):
        for oj in range(HO1):
            c0 = (oi * HO1 + oj) * C1
            for ky in range(3):
                for kx in range(3):
                    i = 2 * oi + ky - 1
                    j = 2 * oj + kx - 1
                    if 0 <= i < W and 0 <= j < W:
                        r0 = (i * W + j) * D_MODEL_F
                        wa[r0:r0 + D_MODEL_F, c0:c0 + C1] = w1[ky, kx, :D_MODEL_F, :]
                        wb[r0:r0 + D_MODEL_F, c0:c0 + C1] = w1[ky, kx, D_MODEL_F:, :]
    bn_bias = np.tile(bias_c, HO1 * HO1).reshape(1, NP)

    # --- conv2 (pad=1, stride=2) + PyTorch CHW .view(M,-1) as a matrix A ------
    w2_np = np.asarray(w2_hwio, np.float32)              # (3, 3, C1, C2)
    A = np.zeros((NP, FEAT_DIM), np.float32)
    for oi in range(HO2):
        for oj in range(HO2):
            for ky in range(3):
                for kx in range(3):
                    i = 2 * oi + ky - 1
                    j = 2 * oj + kx - 1
                    if 0 <= i < HO1 and 0 <= j < HO1:
                        rows = (i * HO1 + j) * C1 + np.arange(C1)
                        cols = np.arange(C2) * (HO2 * HO2) + oi * HO2 + oj
                        A[np.ix_(rows, cols)] = w2_np[ky, kx, :, :]

    # conv2 + flatten + Linear1 of both heads, padded to 128 columns
    wf1 = np.zeros((NP, NP), np.float32)
    wf1[:, :H1] = A @ np.asarray(wr1, np.float32)
    wf1[:, H1:2 * H1] = A @ np.asarray(wc1, np.float32)

    w2p = np.zeros((NP, NP), np.float32)                 # block-diag(wr2, wc2), padded
    w2p[:H1, :H2] = np.asarray(wr2, np.float32)
    w2p[H1:2 * H1, H2:2 * H2] = np.asarray(wc2, np.float32)

    w3p = np.zeros((NP, NP), np.float32)                 # block-diag(wr3, 0.5*wc3), padded
    w3p[:H2, :REG_OUT] = np.asarray(wr3, np.float32)
    w3p[H2:2 * H2, REG_OUT:REG_OUT + 1] = 0.5 * np.asarray(wc3, np.float32)

    # per-lane affine after the single tanh pass: reg lanes pass through,
    # cls lane gets 0.5*(1 + tanh(z/2)) == sigmoid(z), padded lanes -> 0.
    out_scale = np.zeros((1, NP), np.float32)
    out_scale[0, :REG_OUT] = 1.0
    out_scale[0, REG_OUT] = 0.5
    out_bias = np.zeros((1, NP), np.float32)
    out_bias[0, REG_OUT] = 0.5

    cd = compute_dtype
    return dict(
        wa=jnp.asarray(wa, cd), wb=jnp.asarray(wb, cd),
        bn_bias=jnp.asarray(bn_bias, jnp.float32),
        wf1=jnp.asarray(wf1, cd), w2=jnp.asarray(w2p, cd), w3=jnp.asarray(w3p, cd),
        out_scale=jnp.asarray(out_scale, jnp.float32),
        out_bias=jnp.asarray(out_bias, jnp.float32))


# --------------------------- pure-JAX reference -----------------------------
def reference_forward(feat_f0, feat_f1, rp):
    """Direct transcription of the PyTorch module (NCHW convs, unfused weights)."""
    m = feat_f0.shape[0]
    x0 = jnp.transpose(feat_f0.reshape(m, W, W, D_MODEL_F), (0, 3, 1, 2))
    x1 = jnp.transpose(feat_f1.reshape(m, W, W, D_MODEL_F), (0, 3, 1, 2))
    x = jnp.concatenate([x0, x1], axis=1)                  # [M, 2C, W, W]
    y = lax.conv_general_dilated(x, rp["w1_oihw"], (2, 2), ((1, 1), (1, 1)),
                                 dimension_numbers=("NCHW", "OIHW", "NCHW"))
    inv_std = 1.0 / jnp.sqrt(rp["r_var"] + 1e-5)
    y = (y - rp["r_mean"][None, :, None, None]) * inv_std[None, :, None, None]
    y = y * rp["gamma"][None, :, None, None] + rp["beta"][None, :, None, None]
    y = jnp.maximum(y, 0.0)
    z = lax.conv_general_dilated(y, rp["w2_oihw"], (2, 2), ((1, 1), (1, 1)),
                                 dimension_numbers=("NCHW", "OIHW", "NCHW"))
    z = z.reshape(m, -1)                                   # .view(M, -1) -> CHW order

    reg = jnp.tanh(_leaky(_leaky(z @ rp["wr1"]) @ rp["wr2"]) @ rp["wr3"])
    cls = jax.nn.sigmoid(_leaky(_leaky(z @ rp["wc1"]) @ rp["wc2"]) @ rp["wc3"])
    return reg, cls


# --------------------------------- main --------------------------------------
if __name__ == "__main__":
    M = 2
    key = jax.random.PRNGKey(0)
    ks = jax.random.split(key, 18)
    feat_f0 = jax.random.normal(ks[0], (M, WW, D_MODEL_F), jnp.float32)
    feat_f1 = jax.random.normal(ks[1], (M, WW, D_MODEL_F), jnp.float32)

    # conv weights (HWIO), deterministic synthetic init
    w1_hwio = 0.2 * jax.random.normal(ks[2], (3, 3, C_IN, C1), jnp.float32)
    w2_hwio = 0.2 * jax.random.normal(ks[3], (3, 3, C1, C2), jnp.float32)

    # BatchNorm2d params (inference mode: running stats)
    gamma = 1.0 + 0.1 * jax.random.normal(ks[4], (C1,), jnp.float32)
    beta = 0.1 * jax.random.normal(ks[5], (C1,), jnp.float32)
    r_mean = 0.1 * jax.random.normal(ks[6], (C1,), jnp.float32)
    r_var = 1.0 + 0.1 * jnp.abs(jax.random.normal(ks[7], (C1,), jnp.float32))

    # Linear weights stored as [in, out] (== PyTorch weight.T), bias=False
    wr1 = 0.2 * jax.random.normal(ks[8], (FEAT_DIM, H1), jnp.float32)
    wr2 = 0.2 * jax.random.normal(ks[9], (H1, H2), jnp.float32)
    wr3 = 0.2 * jax.random.normal(ks[10], (H2, REG_OUT), jnp.float32)
    wc1 = 0.2 * jax.random.normal(ks[11], (FEAT_DIM, H1), jnp.float32)
    wc2 = 0.2 * jax.random.normal(ks[12], (H1, H2), jnp.float32)
    wc3 = 0.2 * jax.random.normal(ks[13], (H2, 1), jnp.float32)

    raw = (w1_hwio, w2_hwio, gamma, beta, r_mean, r_var,
           wr1, wr2, wr3, wc1, wc2, wc3)
    params_f32 = prepare_params(*raw, compute_dtype=jnp.float32)
    params_bf16 = prepare_params(*raw, compute_dtype=jnp.bfloat16)  # v6e/v7x path
    ref_params = dict(
        w1_oihw=jnp.transpose(w1_hwio, (3, 2, 0, 1)),
        w2_oihw=jnp.transpose(w2_hwio, (3, 2, 0, 1)),
        gamma=gamma, beta=beta, r_mean=r_mean, r_var=r_var,
        wr1=wr1, wr2=wr2, wr3=wr3, wc1=wc1, wc2=wc2, wc3=wc3)

    fwd = jax.jit(fine_matching_feat_reg_cls, static_argnames=("tm_max",))

    # 1) small M (single 8-row tile), f32 operands -> exact-ish match
    reg, cls = jax.block_until_ready(fwd(feat_f0, feat_f1, params_f32))
    reg_ref, cls_ref = reference_forward(feat_f0, feat_f1, ref_params)
    assert reg.shape == (M, REG_OUT) and cls.shape == (M, 1)
    assert jnp.allclose(reg, reg_ref, atol=1e-4, rtol=1e-4)
    assert jnp.allclose(cls, cls_ref, atol=1e-4, rtol=1e-4)

    # 2) multi-tile grid over M (padding + 3 grid steps), f32 operands
    Mb = 300
    f0b = jax.random.normal(ks[14], (Mb, WW, D_MODEL_F), jnp.float32)
    f1b = jax.random.normal(ks[15], (Mb, WW, D_MODEL_F), jnp.float32)
    regb, clsb = jax.block_until_ready(fwd(f0b, f1b, params_f32, tm_max=128))
    regb_ref, clsb_ref = reference_forward(f0b, f1b, ref_params)
    assert regb.shape == (Mb, REG_OUT) and clsb.shape == (Mb, 1)
    assert jnp.allclose(regb, regb_ref, atol=1e-4, rtol=1e-4)
    assert jnp.allclose(clsb, clsb_ref, atol=1e-4, rtol=1e-4)

    # 3) bf16 operand path (v6e/v7x MXU-native), f32 accumulation -> loose check
    regh, clsh = jax.block_until_ready(fwd(feat_f0, feat_f1, params_bf16))
    assert regh.shape == (M, REG_OUT) and clsh.shape == (M, 1)
    assert jnp.all(jnp.abs(regh - reg_ref) < 0.2)
    assert jnp.all(jnp.abs(clsh - cls_ref) < 0.2)

    print("KERNEL_OK")
</pallas_src>

<mosaic_0001>
module attributes {stable_mosaic.version = 11 : i64} {
  func.func @_fused_kernel(%arg0: i32, %arg1: memref<8x256xf32, #tpu.memory_space<vmem>>, %arg2: memref<8x256xf32, #tpu.memory_space<vmem>>, %arg3: memref<256x128xf32, #tpu.memory_space<vmem>>, %arg4: memref<256x128xf32, #tpu.memory_space<vmem>>, %arg5: memref<1x128xf32, #tpu.memory_space<vmem>>, %arg6: memref<128x128xf32, #tpu.memory_space<vmem>>, %arg7: memref<128x128xf32, #tpu.memory_space<vmem>>, %arg8: memref<128x128xf32, #tpu.memory_space<vmem>>, %arg9: memref<1x128xf32, #tpu.memory_space<vmem>>, %arg10: memref<1x128xf32, #tpu.memory_space<vmem>>, %arg11: memref<8x128xf32, #tpu.memory_space<vmem>>) attributes {dimension_semantics = [#tpu.dimension_semantics<parallel>], iteration_bounds = array<i64: 1>, scalar_prefetch = 0 : i64, scratch_operands = 0 : i64, tpu.core_type = #tpu.core_type<tc>, window_params = [{transform_indices = @transform_0, window_bounds = array<i64: 8, 256>}, {transform_indices = @transform_1, window_bounds = array<i64: 8, 256>}, {pipeline_mode = #tpu.pipeline_mode<synchronous>, transform_indices = @transform_2, window_bounds = array<i64: 256, 128>}, {pipeline_mode = #tpu.pipeline_mode<synchronous>, transform_indices = @transform_3, window_bounds = array<i64: 256, 128>}, {pipeline_mode = #tpu.pipeline_mode<synchronous>, transform_indices = @transform_4, window_bounds = array<i64: 1, 128>}, {pipeline_mode = #tpu.pipeline_mode<synchronous>, transform_indices = @transform_5, window_bounds = array<i64: 128, 128>}, {pipeline_mode = #tpu.pipeline_mode<synchronous>, transform_indices = @transform_6, window_bounds = array<i64: 128, 128>}, {pipeline_mode = #tpu.pipeline_mode<synchronous>, transform_indices = @transform_7, window_bounds = array<i64: 128, 128>}, {pipeline_mode = #tpu.pipeline_mode<synchronous>, transform_indices = @transform_8, window_bounds = array<i64: 1, 128>}, {pipeline_mode = #tpu.pipeline_mode<synchronous>, transform_indices = @transform_9, window_bounds = array<i64: 1, 128>}, {transform_indices = @transform_10, window_bounds = array<i64: 8, 128>}]} {
    %c0 = arith.constant 0 : index
    %c0_0 = arith.constant 0 : index
    %0 = vector.load %arg1[%c0, %c0_0] : memref<8x256xf32, #tpu.memory_space<vmem>>, vector<8x256xf32>
    %c0_1 = arith.constant 0 : index
    %c0_2 = arith.constant 0 : index
    %1 = vector.load %arg3[%c0_1, %c0_2] : memref<256x128xf32, #tpu.memory_space<vmem>>, vector<256x128xf32>
    %cst = arith.constant dense<0.000000e+00> : vector<8x128xf32>
    %2 = tpu.matmul %0, %1, %cst {dimension_numbers = #tpu.dot_dimension_numbers<[1], [0], [0], [1], [0, 0, 1, 1], [], []>} : vector<8x256xf32>, vector<256x128xf32>, vector<8x128xf32> -> vector<8x128xf32>
    %c0_3 = arith.constant 0 : index
    %c0_4 = arith.constant 0 : index
    %3 = vector.load %arg2[%c0_3, %c0_4] : memref<8x256xf32, #tpu.memory_space<vmem>>, vector<8x256xf32>
    %c0_5 = arith.constant 0 : index
    %c0_6 = arith.constant 0 : index
    %4 = vector.load %arg4[%c0_5, %c0_6] : memref<256x128xf32, #tpu.memory_space<vmem>>, vector<256x128xf32>
    %cst_7 = arith.constant dense<0.000000e+00> : vector<8x128xf32>
    %5 = tpu.matmul %3, %4, %cst_7 {dimension_numbers = #tpu.dot_dimension_numbers<[1], [0], [0], [1], [0, 0, 1, 1], [], []>} : vector<8x256xf32>, vector<256x128xf32>, vector<8x128xf32> -> vector<8x128xf32>
    %6 = arith.addf %2, %5 : vector<8x128xf32>
    %c0_8 = arith.constant 0 : index
    %c0_9 = arith.constant 0 : index
    %7 = vector.load %arg5[%c0_8, %c0_9] : memref<1x128xf32, #tpu.memory_space<vmem>>, vector<1x128xf32>
    %8 = vector.broadcast %7 : vector<1x128xf32> to vector<8x128xf32>
    %9 = arith.addf %6, %8 : vector<8x128xf32>
    %cst_10 = arith.constant 0.000000e+00 : f32
    %10 = vector.broadcast %cst_10 : f32 to vector<8x128xf32>
    %11 = arith.maximumf %9, %10 : vector<8x128xf32>
    %c0_11 = arith.constant 0 : index
    %c0_12 = arith.constant 0 : index
    %12 = vector.load %arg6[%c0_11, %c0_12] : memref<128x128xf32, #tpu.memory_space<vmem>>, vector<128x128xf32>
    %cst_13 = arith.constant dense<0.000000e+00> : vector<8x128xf32>
    %13 = tpu.matmul %11, %12, %cst_13 {dimension_numbers = #tpu.dot_dimension_numbers<[1], [0], [0], [1], [0, 0, 1, 1], [], []>} : vector<8x128xf32>, vector<128x128xf32>, vector<8x128xf32> -> vector<8x128xf32>
    %cst_14 = arith.constant 0.000000e+00 : f32
    %14 = vector.broadcast %cst_14 : f32 to vector<8x128xf32>
    %15 = arith.cmpf ogt, %13, %14 : vector<8x128xf32>
    %cst_15 = arith.constant 0.00999999977 : f32
    %16 = vector.broadcast %cst_15 : f32 to vector<8x128xf32>
    %17 = arith.mulf %16, %13 : vector<8x128xf32>
    %18 = arith.select %15, %13, %17 : vector<8x128xi1>, vector<8x128xf32>
    %c0_16 = arith.constant 0 : index
    %c0_17 = arith.constant 0 : index
    %19 = vector.load %arg7[%c0_16, %c0_17] : memref<128x128xf32, #tpu.memory_space<vmem>>, vector<128x128xf32>
    %cst_18 = arith.constant dense<0.000000e+00> : vector<8x128xf32>
    %20 = tpu.matmul %18, %19, %cst_18 {dimension_numbers = #tpu.dot_dimension_numbers<[1], [0], [0], [1], [0, 0, 1, 1], [], []>} : vector<8x128xf32>, vector<128x128xf32>, vector<8x128xf32> -> vector<8x128xf32>
    %cst_19 = arith.constant 0.000000e+00 : f32
    %21 = vector.broadcast %cst_19 : f32 to vector<8x128xf32>
    %22 = arith.cmpf ogt, %20, %21 : vector<8x128xf32>
    %cst_20 = arith.constant 0.00999999977 : f32
    %23 = vector.broadcast %cst_20 : f32 to vector<8x128xf32>
    %24 = arith.mulf %23, %20 : vector<8x128xf32>
    %25 = arith.select %22, %20, %24 : vector<8x128xi1>, vector<8x128xf32>
    %c0_21 = arith.constant 0 : index
    %c0_22 = arith.constant 0 : index
    %26 = vector.load %arg8[%c0_21, %c0_22] : memref<128x128xf32, #tpu.memory_space<vmem>>, vector<128x128xf32>
    %cst_23 = arith.constant dense<0.000000e+00> : vector<8x128xf32>
    %27 = tpu.matmul %25, %26, %cst_23 {dimension_numbers = #tpu.dot_dimension_numbers<[1], [0], [0], [1], [0, 0, 1, 1], [], []>} : vector<8x128xf32>, vector<128x128xf32>, vector<8x128xf32> -> vector<8x128xf32>
    %28 = math.tanh %27 : vector<8x128xf32>
    %c0_24 = arith.constant 0 : index
    %c0_25 = arith.constant 0 : index
    %29 = vector.load %arg9[%c0_24, %c0_25] : memref<1x128xf32, #tpu.memory_space<vmem>>, vector<1x128xf32>
    %30 = vector.broadcast %29 : vector<1x128xf32> to vector<8x128xf32>
    %31 = arith.mulf %28, %30 : vector<8x128xf32>
    %c0_26 = arith.constant 0 : index
    %c0_27 = arith.constant 0 : index
    %32 = vector.load %arg10[%c0_26, %c0_27] : memref<1x128xf32, #tpu.memory_space<vmem>>, vector<1x128xf32>
    %33 = vector.broadcast %32 : vector<1x128xf32> to vector<8x128xf32>
    %34 = arith.addf %31, %33 : vector<8x128xf32>
    %c0_28 = arith.constant 0 : index
    %c0_29 = arith.constant 0 : index
    %35 = vector.load %arg11[%c0_28, %c0_29] : memref<8x128xf32, #tpu.memory_space<vmem>>, vector<8x128xf32>
    tpu.vector_store %arg11[%c0_28, %c0_29], %34 {strides = array<i32>} : memref<8x128xf32, #tpu.memory_space<vmem>>, vector<8x128xf32>,
    return
  }
  func.func @transform_0(%arg0: i32) -> (i32, i32) {
    %c0_i32 = arith.constant 0 : i32
    %c0_i32_0 = arith.constant 0 : i32
    return %arg0, %c0_i32 : i32, i32
  }
  func.func @transform_1(%arg0: i32) -> (i32, i32) {
    %c0_i32 = arith.constant 0 : i32
    %c0_i32_0 = arith.constant 0 : i32
    return %arg0, %c0_i32 : i32, i32
  }
  func.func @transform_2(%arg0: i32) -> (i32, i32) {
    %c0_i32 = arith.constant 0 : i32
    %c0_i32_0 = arith.constant 0 : i32
    %c0_i32_1 = arith.constant 0 : i32
    return %c0_i32, %c0_i32_0 : i32, i32
  }
  func.func @transform_3(%arg0: i32) -> (i32, i32) {
    %c0_i32 = arith.constant 0 : i32
    %c0_i32_0 = arith.constant 0 : i32
    %c0_i32_1 = arith.constant 0 : i32
    return %c0_i32, %c0_i32_0 : i32, i32
  }
  func.func @transform_4(%arg0: i32) -> (i32, i32) {
    %c0_i32 = arith.constant 0 : i32
    %c0_i32_0 = arith.constant 0 : i32
    %c0_i32_1 = arith.constant 0 : i32
    return %c0_i32, %c0_i32_0 : i32, i32
  }
  func.func @transform_5(%arg0: i32) -> (i32, i32) {
    %c0_i32 = arith.constant 0 : i32
    %c0_i32_0 = arith.constant 0 : i32
    %c0_i32_1 = arith.constant 0 : i32
    return %c0_i32, %c0_i32_0 : i32, i32
  }
  func.func @transform_6(%arg0: i32) -> (i32, i32) {
    %c0_i32 = arith.constant 0 : i32
    %c0_i32_0 = arith.constant 0 : i32
    %c0_i32_1 = arith.constant 0 : i32
    return %c0_i32, %c0_i32_0 : i32, i32
  }
  func.func @transform_7(%arg0: i32) -> (i32, i32) {
    %c0_i32 = arith.constant 0 : i32
    %c0_i32_0 = arith.constant 0 : i32
    %c0_i32_1 = arith.constant 0 : i32
    return %c0_i32, %c0_i32_0 : i32, i32
  }
  func.func @transform_8(%arg0: i32) -> (i32, i32) {
    %c0_i32 = arith.constant 0 : i32
    %c0_i32_0 = arith.constant 0 : i32
    %c0_i32_1 = arith.constant 0 : i32
    return %c0_i32, %c0_i32_0 : i32, i32
  }
  func.func @transform_9(%arg0: i32) -> (i32, i32) {
    %c0_i32 = arith.constant 0 : i32
    %c0_i32_0 = arith.constant 0 : i32
    %c0_i32_1 = arith.constant 0 : i32
    return %c0_i32, %c0_i32_0 : i32, i32
  }
  func.func @transform_10(%arg0: i32) -> (i32, i32) {
    %c0_i32 = arith.constant 0 : i32
    %c0_i32_0 = arith.constant 0 : i32
    return %arg0, %c0_i32 : i32, i32
  }
}

</mosaic_0001>

<llo_original>
// kernel: fine_matching_feat_reg_cls.1
$region0: #{fine_matching_feat_reg_cls.1}
  #allocation0 [shape = 'u32[]', space=smem, size = 0x4, offset = 0x4, fixed_abs, tag = 'smem constant byte address 0x4 - core index']
  #allocation1 [shape = 'u32[144,128]{1,0:T(1,128)}', space=vmem, size = 0x12000, scoped, tag = 'internal scratch']
  %s0 = inlined_call_operand.vmem [shape: f32[8,256], index: 0, kind: input, shape index: {}]
  %s1 = inlined_call_operand.vmem [shape: f32[8,256], index: 1, kind: input, shape index: {}]
  %s2 = inlined_call_operand.vmem [shape: f32[256,128], index: 2, kind: input, shape index: {}]
  %s3 = inlined_call_operand.vmem [shape: f32[256,128], index: 3, kind: input, shape index: {}]
  %s4 = inlined_call_operand.vmem [shape: f32[1,128], index: 4, kind: input, shape index: {}]
  %s5 = inlined_call_operand.hbm [shape: f32[128,128], index: 5, kind: input, shape index: {}]
  %s6 = inlined_call_operand.hbm [shape: f32[128,128], index: 6, kind: input, shape index: {}]
  %s7 = inlined_call_operand.hbm [shape: f32[128,128], index: 7, kind: input, shape index: {}]
  %s8 = inlined_call_operand.vmem [shape: f32[1,128], index: 8, kind: input, shape index: {}]
  %s9 = inlined_call_operand.vmem [shape: f32[1,128], index: 9, kind: input, shape index: {}]
  %s10 = inlined_call_operand.vmem [shape: f32[8,128], index: 10, kind: output, shape index: {}]
  %s11 = sld [smem:[#allocation0]]
  $region62: #{fine_matching_feat_reg_cls.1} parent=0
    _
  %s13 = ssub.s32 1, %s11
  %s14 = scalar_select 0, %s13, %s11
  $region1: #{fine_matching_feat_reg_cls.1} parent=0
    #allocation2 [shape = 'u8[65536]{0}', space=vmem, size = 0x10000, scoped, tag = 'input window, operand 5, single buffered']
    #allocation3 [shape = 's32[1]{0}', space=sflag, size = 0x4, scoped, tag = 'scoped memory for fine_matching_feat_reg_cls.1']
    #allocation4 [shape = 'u8[65536]{0}', space=vmem, size = 0x10000, scoped, tag = 'input window, operand 6, single buffered']
    #allocation5 [shape = 's32[1]{0}', space=sflag, size = 0x4, scoped, tag = 'scoped memory for fine_matching_feat_reg_cls.1']
    #allocation6 [shape = 'u8[65536]{0}', space=vmem, size = 0x10000, scoped, tag = 'input window, operand 7, single buffered']
    %15 = vsyncpa [#allocation3], 0
    %16 = vsyncpa [#allocation5], 0
    // Predicated region
    $region2: #{fine_matching_feat_reg_cls.1} parent=1 // pred_check
      _
    $region3: #{fine_matching_feat_reg_cls.1} parent=1 // pred_check_branch
      %18 = sbr.rel (0) target = $region5
    $region4: #{fine_matching_feat_reg_cls.1} parent=1 // pred_region
      _
    $region5: #{fine_matching_feat_reg_cls.1} parent=1 // pred_fallthru
      _
    // Predicated region
    $region6: #{fine_matching_feat_reg_cls.1} parent=1 // pred_check
      _
    $region7: #{fine_matching_feat_reg_cls.1} parent=1 // pred_check_branch
      %20 = sbr.rel (0) target = $region9
    $region8: #{fine_matching_feat_reg_cls.1} parent=1 // pred_region
      _
    $region9: #{fine_matching_feat_reg_cls.1} parent=1 // pred_fallthru
      _
    // Predicated region
    $region10: #{fine_matching_feat_reg_cls.1} parent=1 // pred_check
      _
    $region11: #{fine_matching_feat_reg_cls.1} parent=1 // pred_check_branch
      %22 = sbr.rel (0) target = $region13
    $region12: #{fine_matching_feat_reg_cls.1} parent=1 // pred_region
      _
    $region13: #{fine_matching_feat_reg_cls.1} parent=1 // pred_fallthru
      _
    // Predicated region
    $region14: #{fine_matching_feat_reg_cls.1} parent=1 // pred_check
      _
    $region15: #{fine_matching_feat_reg_cls.1} parent=1 // pred_check_branch
      %24 = sbr.rel (0) target = $region17
    $region16: #{fine_matching_feat_reg_cls.1} parent=1 // pred_region
      _
    $region17: #{fine_matching_feat_reg_cls.1} parent=1 // pred_fallthru
      _
    // Predicated region
    $region18: #{fine_matching_feat_reg_cls.1} parent=1 // pred_check
      _
    $region19: #{fine_matching_feat_reg_cls.1} parent=1 // pred_check_branch
      %26 = sbr.rel (0) target = $region21
    $region20: #{fine_matching_feat_reg_cls.1} parent=1 // pred_region
      _
    $region21: #{fine_matching_feat_reg_cls.1} parent=1 // pred_fallthru
      _
    // Predicated region
    $region22: #{fine_matching_feat_reg_cls.1} parent=1 // pred_check
      _
    $region23: #{fine_matching_feat_reg_cls.1} parent=1 // pred_check_branch
      %28 = sbr.rel (0) target = $region25
    $region24: #{fine_matching_feat_reg_cls.1} parent=1 // pred_region
      %s30 = ssub.s32 2048, 2048
      %31 = vsyncadd [#allocation3], %s30
      %s32 = sshll.u32 [#allocation2], 4
      %s33 = int_to_ptr.vmem [resolvable:$true] %s32
      %38 = dma.hbm_to_vmem [thread:$0]  %s5, 2048, %s33, [#allocation3], 128, 128, 8
    $region25: #{fine_matching_feat_reg_cls.1} parent=1 // pred_fallthru
      _
    // Predicated region
    $region26: #{fine_matching_feat_reg_cls.1} parent=1 // pred_check
      _
    $region27: #{fine_matching_feat_reg_cls.1} parent=1 // pred_check_branch
      %40 = sbr.rel (0) target = $region29
    $region28: #{fine_matching_feat_reg_cls.1} parent=1 // pred_region
      %s42 = ssub.s32 2048, 2048
      %43 = vsyncadd [#allocation5], %s42
      %s44 = sshll.u32 [#allocation4], 4
      %s45 = int_to_ptr.vmem [resolvable:$true] %s44
      %50 = dma.hbm_to_vmem [thread:$0]  %s6, 2048, %s45, [#allocation5], 128, 128, 8
    $region29: #{fine_matching_feat_reg_cls.1} parent=1 // pred_fallthru
      _
    // Predicated region
    $region30: #{fine_matching_feat_reg_cls.1} parent=1 // pred_check
      _
    $region31: #{fine_matching_feat_reg_cls.1} parent=1 // pred_check_branch
      %52 = sbr.rel (0) target = $region33
    $region32: #{fine_matching_feat_reg_cls.1} parent=1 // pred_region
      %s54 = ssub.s32 2048, 2048
      %55 = vsyncadd [#allocation5], %s54
      %s56 = sshll.u32 [#allocation6], 4
      %s57 = int_to_ptr.vmem [resolvable:$true] %s56
      %62 = dma.hbm_to_vmem [thread:$0]  %s7, 2048, %s57, [#allocation5], 128, 128, 8
    $region33: #{fine_matching_feat_reg_cls.1} parent=1 // pred_fallthru
      _
    // Predicated region
    $region34: #{fine_matching_feat_reg_cls.1} parent=1 // pred_check
      _
    $region35: #{fine_matching_feat_reg_cls.1} parent=1 // pred_check_branch
      %64 = sbr.rel (0) target = $region37
    $region36: #{fine_matching_feat_reg_cls.1} parent=1 // pred_region
      _
    $region37: #{fine_matching_feat_reg_cls.1} parent=1 // pred_fallthru
      _
    // Predicated region
    $region38: #{fine_matching_feat_reg_cls.1} parent=1 // pred_check
      _
    $region39: #{fine_matching_feat_reg_cls.1} parent=1 // pred_check_branch
      %66 = sbr.rel (0) target = $region41
    $region40: #{fine_matching_feat_reg_cls.1} parent=1 // pred_region
      _
    $region41: #{fine_matching_feat_reg_cls.1} parent=1 // pred_fallthru
      _
    // Predicated region
    $region42: #{fine_matching_feat_reg_cls.1} parent=1 // pred_check
      _
    $region43: #{fine_matching_feat_reg_cls.1} parent=1 // pred_check_branch
      %68 = sbr.rel (0) target = $region45
    $region44: #{fine_matching_feat_reg_cls.1} parent=1 // pred_region
      %69 = dma.done [#allocation3], 2048
    $region45: #{fine_matching_feat_reg_cls.1} parent=1 // pred_fallthru
      _
    // Predicated region
    $region46: #{fine_matching_feat_reg_cls.1} parent=1 // pred_check
      _
    $region47: #{fine_matching_feat_reg_cls.1} parent=1 // pred_check_branch
      %71 = sbr.rel (0) target = $region49
    $region48: #{fine_matching_feat_reg_cls.1} parent=1 // pred_region
      %72 = dma.done [#allocation5], 2048
    $region49: #{fine_matching_feat_reg_cls.1} parent=1 // pred_fallthru
      _
    // Predicated region
    $region50: #{fine_matching_feat_reg_cls.1} parent=1 // pred_check
      _
    $region51: #{fine_matching_feat_reg_cls.1} parent=1 // pred_check_branch
      %74 = sbr.rel (0) target = $region53
    $region52: #{fine_matching_feat_reg_cls.1} parent=1 // pred_region
      %75 = dma.done [#allocation5], 2048
    $region53: #{fine_matching_feat_reg_cls.1} parent=1 // pred_fallthru
      _
    %v76 = vld [vmem:[%s0] sm:$0xff]
    %v77 = vld [vmem:[%s0 + $0x8] sm:$0xff]
    %v78 = vld [vmem:[%s2] sm:$0xff]
    %v79 = vld [vmem:[%s2 + $0x8] sm:$0xff]
    %v80 = vld [vmem:[%s2 + $0x10] sm:$0xff]
    %v81 = vld [vmem:[%s2 + $0x18] sm:$0xff]
    %v82 = vld [vmem:[%s2 + $0x20] sm:$0xff]
    %v83 = vld [vmem:[%s2 + $0x28] sm:$0xff]
    %v84 = vld [vmem:[%s2 + $0x30] sm:$0xff]
    %v85 = vld [vmem:[%s2 + $0x38] sm:$0xff]
    %v86 = vld [vmem:[%s2 + $0x40] sm:$0xff]
    %v87 = vld [vmem:[%s2 + $0x48] sm:$0xff]
    %v88 = vld [vmem:[%s2 + $0x50] sm:$0xff]
    %v89 = vld [vmem:[%s2 + $0x58] sm:$0xff]
    %v90 = vld [vmem:[%s2 + $0x60] sm:$0xff]
    %v91 = vld [vmem:[%s2 + $0x68] sm:$0xff]
    %v92 = vld [vmem:[%s2 + $0x70] sm:$0xff]
    %v93 = vld [vmem:[%s2 + $0x78] sm:$0xff]
    %v94 = vld [vmem:[%s2 + $0x80] sm:$0xff]
    %v95 = vld [vmem:[%s2 + $0x88] sm:$0xff]
    %v96 = vld [vmem:[%s2 + $0x90] sm:$0xff]
    %v97 = vld [vmem:[%s2 + $0x98] sm:$0xff]
    %v98 = vld [vmem:[%s2 + $0xa0] sm:$0xff]
    %v99 = vld [vmem:[%s2 + $0xa8] sm:$0xff]
    %v100 = vld [vmem:[%s2 + $0xb0] sm:$0xff]
    %v101 = vld [vmem:[%s2 + $0xb8] sm:$0xff]
    %v102 = vld [vmem:[%s2 + $0xc0] sm:$0xff]
    %v103 = vld [vmem:[%s2 + $0xc8] sm:$0xff]
    %v104 = vld [vmem:[%s2 + $0xd0] sm:$0xff]
    %v105 = vld [vmem:[%s2 + $0xd8] sm:$0xff]
    %v106 = vld [vmem:[%s2 + $0xe0] sm:$0xff]
    %v107 = vld [vmem:[%s2 + $0xe8] sm:$0xff]
    %v108 = vld [vmem:[%s2 + $0xf0] sm:$0xff]
    %v109 = vld [vmem:[%s2 + $0xf8] sm:$0xff]
    %v110 = vld [vmem:[%s1] sm:$0xff]
    %v111 = vld [vmem:[%s1 + $0x8] sm:$0xff]
    %v112 = vld [vmem:[%s3] sm:$0xff]
    %v113 = vld [vmem:[%s3 + $0x8] sm:$0xff]
    %v114 = vld [vmem:[%s3 + $0x10] sm:$0xff]
    %v115 = vld [vmem:[%s3 + $0x18] sm:$0xff]
    %v116 = vld [vmem:[%s3 + $0x20] sm:$0xff]
    %v117 = vld [vmem:[%s3 + $0x28] sm:$0xff]
    %v118 = vld [vmem:[%s3 + $0x30] sm:$0xff]
    %v119 = vld [vmem:[%s3 + $0x38] sm:$0xff]
    %v120 = vld [vmem:[%s3 + $0x40] sm:$0xff]
    %v121 = vld [vmem:[%s3 + $0x48] sm:$0xff]
    %v122 = vld [vmem:[%s3 + $0x50] sm:$0xff]
    %v123 = vld [vmem:[%s3 + $0x58] sm:$0xff]
    %v124 = vld [vmem:[%s3 + $0x60] sm:$0xff]
    %v125 = vld [vmem:[%s3 + $0x68] sm:$0xff]
    %v126 = vld [vmem:[%s3 + $0x70] sm:$0xff]
    %v127 = vld [vmem:[%s3 + $0x78] sm:$0xff]
    %v128 = vld [vmem:[%s3 + $0x80] sm:$0xff]
    %v129 = vld [vmem:[%s3 + $0x88] sm:$0xff]
    %v130 = vld [vmem:[%s3 + $0x90] sm:$0xff]
    %v131 = vld [vmem:[%s3 + $0x98] sm:$0xff]
    %v132 = vld [vmem:[%s3 + $0xa0] sm:$0xff]
    %v133 = vld [vmem:[%s3 + $0xa8] sm:$0xff]
    %v134 = vld [vmem:[%s3 + $0xb0] sm:$0xff]
    %v135 = vld [vmem:[%s3 + $0xb8] sm:$0xff]
    %v136 = vld [vmem:[%s3 + $0xc0] sm:$0xff]
    %v137 = vld [vmem:[%s3 + $0xc8] sm:$0xff]
    %v138 = vld [vmem:[%s3 + $0xd0] sm:$0xff]
    %v139 = vld [vmem:[%s3 + $0xd8] sm:$0xff]
    %v140 = vld [vmem:[%s3 + $0xe0] sm:$0xff]
    %v141 = vld [vmem:[%s3 + $0xe8] sm:$0xff]
    %v142 = vld [vmem:[%s3 + $0xf0] sm:$0xff]
    %v143 = vld [vmem:[%s3 + $0xf8] sm:$0xff]
    %144 = vmatprep.subr.mxu0 0.0
    %145 = vmatpush1.msra.mxu0 %v112
    %146 = vmatprep.subr.mxu0 0.0
    %147 = vmatpush1.msra.mxu0 %v113
    %148 = vmatprep.subr.mxu0 0.0
    %149 = vmatpush1.msra.mxu0 %v114
    %150 = vmatprep.subr.mxu0 0.0
    %151 = vmatpush1.msra.mxu0 %v115
    %152 = vmatprep.subr.mxu0 0.0
    %153 = vmatpush1.msra.mxu0 %v116
    %154 = vmatprep.subr.mxu0 0.0
    %155 = vmatpush1.msra.mxu0 %v117
    %156 = vmatprep.subr.mxu0 0.0
    %157 = vmatpush1.msra.mxu0 %v118
    %158 = vmatprep.subr.mxu0 0.0
    %159 = vmatpush1.msra.mxu0 %v119
    %160 = vmatprep.subr.mxu0 0.0
    %161 = vmatpush1.msra.mxu0 %v120
    %162 = vmatprep.subr.mxu0 0.0
    %163 = vmatpush1.msra.mxu0 %v121
    %164 = vmatprep.subr.mxu0 0.0
    %165 = vmatpush1.msra.mxu0 %v122
    %166 = vmatprep.subr.mxu0 0.0
    %167 = vmatpush1.msra.mxu0 %v123
    %168 = vmatprep.subr.mxu0 0.0
    %169 = vmatpush1.msra.mxu0 %v124
    %170 = vmatprep.subr.mxu0 0.0
    %171 = vmatpush1.msra.mxu0 %v125
    %172 = vmatprep.subr.mxu0 0.0
    %173 = vmatpush1.msra.mxu0 %v126
    %174 = vmatprep.subr.mxu0 0.0
    %175 = vmatpush1.msra.mxu0 %v127
    %176 = vmatprep.subr.mxu0 0.0
    %177 = vmatpush1.msra.mxu0 %v128
    %178 = vmatprep.subr.mxu0 0.0
    %179 = vmatpush1.msra.mxu0 %v129
    %180 = vmatprep.subr.mxu0 0.0
    %181 = vmatpush1.msra.mxu0 %v130
    %182 = vmatprep.subr.mxu0 0.0
    %183 = vmatpush1.msra.mxu0 %v131
    %184 = vmatprep.subr.mxu0 0.0
    %185 = vmatpush1.msra.mxu0 %v132
    %186 = vmatprep.subr.mxu0 0.0
    %187 = vmatpush1.msra.mxu0 %v133
    %188 = vmatprep.subr.mxu0 0.0
    %189 = vmatpush1.msra.mxu0 %v134
    %190 = vmatprep.subr.mxu0 0.0
    %191 = vmatpush1.msra.mxu0 %v135
    %192 = vmatprep.subr.mxu0 0.0
    %193 = vmatpush1.msra.mxu0 %v136
    %194 = vmatprep.subr.mxu0 0.0
    %195 = vmatpush1.msra.mxu0 %v137
    %196 = vmatprep.subr.mxu0 0.0
    %197 = vmatpush1.msra.mxu0 %v138
    %198 = vmatprep.subr.mxu0 0.0
    %199 = vmatpush1.msra.mxu0 %v139
    %200 = vmatprep.subr.mxu0 0.0
    %201 = vmatpush1.msra.mxu0 %v140
    %202 = vmatprep.subr.mxu0 0.0
    %203 = vmatpush1.msra.mxu0 %v141
    %204 = vmatprep.subr.mxu0 0.0
    %205 = vmatpush1.msra.mxu0 %v142
    %206 = vmatprep.subr.mxu0 0.0
    %207 = vmatpush1.msra.mxu0 %v143
    %208 = vmatprep.mubr.f32.mxu0 %v111
    %209 = vmatmul.mubr.f32.gmra.mrb[0].mxu0 %v110
    %v210 = vpop.f32.mrb[0].mxu0
    %v211 = vadd.f32 0.0, %v210
    %v212 = vpop.f32.mrb[0].mxu0
    %213 = vdwg.mxu0
    %214 = vmatprep.subr.mxu0 0.0
    %215 = vmatpush1.msra.mxu0 %v78
    %216 = vmatprep.subr.mxu0 0.0
    %217 = vmatpush1.msra.mxu0 %v79
    %218 = vmatprep.subr.mxu0 0.0
    %219 = vmatpush1.msra.mxu0 %v80
    %220 = vmatprep.subr.mxu0 0.0
    %221 = vmatpush1.msra.mxu0 %v81
    %222 = vmatprep.subr.mxu0 0.0
    %223 = vmatpush1.msra.mxu0 %v82
    %224 = vmatprep.subr.mxu0 0.0
    %225 = vmatpush1.msra.mxu0 %v83
    %226 = vmatprep.subr.mxu0 0.0
    %227 = vmatpush1.msra.mxu0 %v84
    %228 = vmatprep.subr.mxu0 0.0
    %229 = vmatpush1.msra.mxu0 %v85
    %230 = vmatprep.subr.mxu0 0.0
    %231 = vmatpush1.msra.mxu0 %v86
    %232 = vmatprep.subr.mxu0 0.0
    %233 = vmatpush1.msra.mxu0 %v87
    %234 = vmatprep.subr.mxu0 0.0
    %235 = vmatpush1.msra.mxu0 %v88
    %236 = vmatprep.subr.mxu0 0.0
    %237 = vmatpush1.msra.mxu0 %v89
    %238 = vmatprep.subr.mxu0 0.0
    %239 = vmatpush1.msra.mxu0 %v90
    %240 = vmatprep.subr.mxu0 0.0
    %241 = vmatpush1.msra.mxu0 %v91
    %242 = vmatprep.subr.mxu0 0.0
    %243 = vmatpush1.msra.mxu0 %v92
    %244 = vmatprep.subr.mxu0 0.0
    %245 = vmatpush1.msra.mxu0 %v93
    %246 = vmatprep.subr.mxu0 0.0
    %247 = vmatpush1.msra.mxu0 %v94
    %248 = vmatprep.subr.mxu0 0.0
    %249 = vmatpush1.msra.mxu0 %v95
    %250 = vmatprep.subr.mxu0 0.0
    %251 = vmatpush1.msra.mxu0 %v96
    %252 = vmatprep.subr.mxu0 0.0
    %253 = vmatpush1.msra.mxu0 %v97
    %254 = vmatprep.subr.mxu0 0.0
    %255 = vmatpush1.msra.mxu0 %v98
    %256 = vmatprep.subr.mxu0 0.0
    %257 = vmatpush1.msra.mxu0 %v99
    %258 = vmatprep.subr.mxu0 0.0
    %259 = vmatpush1.msra.mxu0 %v100
    %260 = vmatprep.subr.mxu0 0.0
    %261 = vmatpush1.msra.mxu0 %v101
    %262 = vmatprep.subr.mxu0 0.0
    %263 = vmatpush1.msra.mxu0 %v102
    %264 = vmatprep.subr.mxu0 0.0
    %265 = vmatpush1.msra.mxu0 %v103
    %266 = vmatprep.subr.mxu0 0.0
    %267 = vmatpush1.msra.mxu0 %v104
    %268 = vmatprep.subr.mxu0 0.0
    %269 = vmatpush1.msra.mxu0 %v105
    %270 = vmatprep.subr.mxu0 0.0
    %271 = vmatpush1.msra.mxu0 %v106
    %272 = vmatprep.subr.mxu0 0.0
    %273 = vmatpush1.msra.mxu0 %v107
    %274 = vmatprep.subr.mxu0 0.0
    %275 = vmatpush1.msra.mxu0 %v108
    %276 = vmatprep.subr.mxu0 0.0
    %277 = vmatpush1.msra.mxu0 %v109
    %278 = vmatprep.mubr.f32.mxu0 %v77
    %279 = vmatmul.mubr.f32.gmra.mrb[0].mxu0 %v76
    %v280 = vpop.f32.mrb[0].mxu0
    %v281 = vadd.f32 %v211, %v280
    %v282 = vpop.f32.mrb[0].mxu0
    %283 = vdwg.mxu0
    %v284 = vld [vmem:[%s4] sm:$0x1]
    %v286 = vlaneseq
    %v287 = vshrl.u32 %v286, 7
    %v288 = vsub.s32 0, %v287
    %v289 = vrot.slane %v284, %v288
    %v291 = vadd.f32 %v281, %v289
    %v292 = vmax.f32 %v291, 0.0
    %v293 = vld [vmem:[#allocation2] sm:$0xff]
    %v294 = vld [vmem:[#allocation2 + $0x8] sm:$0xff]
    %v295 = vld [vmem:[#allocation2 + $0x10] sm:$0xff]
    %v296 = vld [vmem:[#allocation2 + $0x18] sm:$0xff]
    %v297 = vld [vmem:[#allocation2 + $0x20] sm:$0xff]
    %v298 = vld [vmem:[#allocation2 + $0x28] sm:$0xff]
    %v299 = vld [vmem:[#allocation2 + $0x30] sm:$0xff]
    %v300 = vld [vmem:[#allocation2 + $0x38] sm:$0xff]
    %v301 = vld [vmem:[#allocation2 + $0x40] sm:$0xff]
    %v302 = vld [vmem:[#allocation2 + $0x48] sm:$0xff]
    %v303 = vld [vmem:[#allocation2 + $0x50] sm:$0xff]
    %v304 = vld [vmem:[#allocation2 + $0x58] sm:$0xff]
    %v305 = vld [vmem:[#allocation2 + $0x60] sm:$0xff]
    %v306 = vld [vmem:[#allocation2 + $0x68] sm:$0xff]
    %v307 = vld [vmem:[#allocation2 + $0x70] sm:$0xff]
    %v308 = vld [vmem:[#allocation2 + $0x78] sm:$0xff]
    %309 = vmatprep.subr.mxu0 0.0
    %310 = vmatpush1.msra.mxu0 %v293
    %311 = vmatprep.subr.mxu0 0.0
    %312 = vmatpush1.msra.mxu0 %v294
    %313 = vmatprep.subr.mxu0 0.0
    %314 = vmatpush1.msra.mxu0 %v295
    %315 = vmatprep.subr.mxu0 0.0
    %316 = vmatpush1.msra.mxu0 %v296
    %317 = vmatprep.subr.mxu0 0.0
    %318 = vmatpush1.msra.mxu0 %v297
    %319 = vmatprep.subr.mxu0 0.0
    %320 = vmatpush1.msra.mxu0 %v298
    %321 = vmatprep.subr.mxu0 0.0
    %322 = vmatpush1.msra.mxu0 %v299
    %323 = vmatprep.subr.mxu0 0.0
    %324 = vmatpush1.msra.mxu0 %v300
    %325 = vmatprep.subr.mxu0 0.0
    %326 = vmatpush1.msra.mxu0 %v301
    %327 = vmatprep.subr.mxu0 0.0
    %328 = vmatpush1.msra.mxu0 %v302
    %329 = vmatprep.subr.mxu0 0.0
    %330 = vmatpush1.msra.mxu0 %v303
    %331 = vmatprep.subr.mxu0 0.0
    %332 = vmatpush1.msra.mxu0 %v304
    %333 = vmatprep.subr.mxu0 0.0
    %334 = vmatpush1.msra.mxu0 %v305
    %335 = vmatprep.subr.mxu0 0.0
    %336 = vmatpush1.msra.mxu0 %v306
    %337 = vmatprep.subr.mxu0 0.0
    %338 = vmatpush1.msra.mxu0 %v307
    %339 = vmatprep.subr.mxu0 0.0
    %340 = vmatpush1.msra.mxu0 %v308
    %341 = vmatprep.subr.mxu0 0.0
    %342 = vmatpush1.msra.mxu0 0.0
    %343 = vmatprep.subr.mxu0 0.0
    %344 = vmatpush1.msra.mxu0 0.0
    %345 = vmatprep.subr.mxu0 0.0
    %346 = vmatpush1.msra.mxu0 0.0
    %347 = vmatprep.subr.mxu0 0.0
    %348 = vmatpush1.msra.mxu0 0.0
    %349 = vmatprep.subr.mxu0 0.0
    %350 = vmatpush1.msra.mxu0 0.0
    %351 = vmatprep.subr.mxu0 0.0
    %352 = vmatpush1.msra.mxu0 0.0
    %353 = vmatprep.subr.mxu0 0.0
    %354 = vmatpush1.msra.mxu0 0.0
    %355 = vmatprep.subr.mxu0 0.0
    %356 = vmatpush1.msra.mxu0 0.0
    %357 = vmatprep.subr.mxu0 0.0
    %358 = vmatpush1.msra.mxu0 0.0
    %359 = vmatprep.subr.mxu0 0.0
    %360 = vmatpush1.msra.mxu0 0.0
    %361 = vmatprep.subr.mxu0 0.0
    %362 = vmatpush1.msra.mxu0 0.0
    %363 = vmatprep.subr.mxu0 0.0
    %364 = vmatpush1.msra.mxu0 0.0
    %365 = vmatprep.subr.mxu0 0.0
    %366 = vmatpush1.msra.mxu0 0.0
    %367 = vmatprep.subr.mxu0 0.0
    %368 = vmatpush1.msra.mxu0 0.0
    %369 = vmatprep.subr.mxu0 0.0
    %370 = vmatpush1.msra.mxu0 0.0
    %371 = vmatprep.subr.mxu0 0.0
    %372 = vmatpush1.msra.mxu0 0.0
    %373 = vmatprep.mubr.f32.mxu0 0.0
    %374 = vmatmul.mubr.f32.gmra.mrb[0].mxu0 %v292
    %v375 = vpop.f32.mrb[0].mxu0
    %v376 = vadd.f32 0.0, %v375
    %v377 = vpop.f32.mrb[0].mxu0
    %378 = vdwg.mxu0
    %vm379 = vcmp.gt.f32.partialorder %v376, 0.0
    %v380 = vmul.f32 %v376, 0.01
    %v381 = vsel %vm379, %v376, %v380
    %v382 = vld [vmem:[#allocation4] sm:$0xff]
    %v383 = vld [vmem:[#allocation4 + $0x8] sm:$0xff]
    %v384 = vld [vmem:[#allocation4 + $0x10] sm:$0xff]
    %v385 = vld [vmem:[#allocation4 + $0x18] sm:$0xff]
    %v386 = vld [vmem:[#allocation4 + $0x20] sm:$0xff]
    %v387 = vld [vmem:[#allocation4 + $0x28] sm:$0xff]
    %v388 = vld [vmem:[#allocation4 + $0x30] sm:$0xff]
    %v389 = vld [vmem:[#allocation4 + $0x38] sm:$0xff]
    %v390 = vld [vmem:[#allocation4 + $0x40] sm:$0xff]
    %v391 = vld [vmem:[#allocation4 + $0x48] sm:$0xff]
    %v392 = vld [vmem:[#allocation4 + $0x50] sm:$0xff]
    %v393 = vld [vmem:[#allocation4 + $0x58] sm:$0xff]
    %v394 = vld [vmem:[#allocation4 + $0x60] sm:$0xff]
    %v395 = vld [vmem:[#allocation4 + $0x68] sm:$0xff]
    %v396 = vld [vmem:[#allocation4 + $0x70] sm:$0xff]
    %v397 = vld [vmem:[#allocation4 + $0x78] sm:$0xff]
    %398 = vmatprep.subr.mxu0 0.0
    %399 = vmatpush1.msra.mxu0 %v382
    %400 = vmatprep.subr.mxu0 0.0
    %401 = vmatpush1.msra.mxu0 %v383
    %402 = vmatprep.subr.mxu0 0.0
    %403 = vmatpush1.msra.mxu0 %v384
    %404 = vmatprep.subr.mxu0 0.0
    %405 = vmatpush1.msra.mxu0 %v385
    %406 = vmatprep.subr.mxu0 0.0
    %407 = vmatpush1.msra.mxu0 %v386
    %408 = vmatprep.subr.mxu0 0.0
    %409 = vmatpush1.msra.mxu0 %v387
    %410 = vmatprep.subr.mxu0 0.0
    %411 = vmatpush1.msra.mxu0 %v388
    %412 = vmatprep.subr.mxu0 0.0
    %413 = vmatpush1.msra.mxu0 %v389
    %414 = vmatprep.subr.mxu0 0.0
    %415 = vmatpush1.msra.mxu0 %v390
    %416 = vmatprep.subr.mxu0 0.0
    %417 = vmatpush1.msra.mxu0 %v391
    %418 = vmatprep.subr.mxu0 0.0
    %419 = vmatpush1.msra.mxu0 %v392
    %420 = vmatprep.subr.mxu0 0.0
    %421 = vmatpush1.msra.mxu0 %v393
    %422 = vmatprep.subr.mxu0 0.0
    %423 = vmatpush1.msra.mxu0 %v394
    %424 = vmatprep.subr.mxu0 0.0
    %425 = vmatpush1.msra.mxu0 %v395
    %426 = vmatprep.subr.mxu0 0.0
    %427 = vmatpush1.msra.mxu0 %v396
    %428 = vmatprep.subr.mxu0 0.0
    %429 = vmatpush1.msra.mxu0 %v397
    %430 = vmatprep.subr.mxu0 0.0
    %431 = vmatpush1.msra.mxu0 0.0
    %432 = vmatprep.subr.mxu0 0.0
    %433 = vmatpush1.msra.mxu0 0.0
    %434 = vmatprep.subr.mxu0 0.0
    %435 = vmatpush1.msra.mxu0 0.0
    %436 = vmatprep.subr.mxu0 0.0
    %437 = vmatpush1.msra.mxu0 0.0
    %438 = vmatprep.subr.mxu0 0.0
    %439 = vmatpush1.msra.mxu0 0.0
    %440 = vmatprep.subr.mxu0 0.0
    %441 = vmatpush1.msra.mxu0 0.0
    %442 = vmatprep.subr.mxu0 0.0
    %443 = vmatpush1.msra.mxu0 0.0
    %444 = vmatprep.subr.mxu0 0.0
    %445 = vmatpush1.msra.mxu0 0.0
    %446 = vmatprep.subr.mxu0 0.0
    %447 = vmatpush1.msra.mxu0 0.0
    %448 = vmatprep.subr.mxu0 0.0
    %449 = vmatpush1.msra.mxu0 0.0
    %450 = vmatprep.subr.mxu0 0.0
    %451 = vmatpush1.msra.mxu0 0.0
    %452 = vmatprep.subr.mxu0 0.0
    %453 = vmatpush1.msra.mxu0 0.0
    %454 = vmatprep.subr.mxu0 0.0
    %455 = vmatpush1.msra.mxu0 0.0
    %456 = vmatprep.subr.mxu0 0.0
    %457 = vmatpush1.msra.mxu0 0.0
    %458 = vmatprep.subr.mxu0 0.0
    %459 = vmatpush1.msra.mxu0 0.0
    %460 = vmatprep.subr.mxu0 0.0
    %461 = vmatpush1.msra.mxu0 0.0
    %462 = vmatprep.mubr.f32.mxu0 0.0
    %463 = vmatmul.mubr.f32.gmra.mrb[0].mxu0 %v381
    %v464 = vpop.f32.mrb[0].mxu0
    %v465 = vadd.f32 0.0, %v464
    %v466 = vpop.f32.mrb[0].mxu0
    %467 = vdwg.mxu0
    %vm468 = vcmp.gt.f32.partialorder %v465, 0.0
    %v469 = vmul.f32 %v465, 0.01
    %v470 = vsel %vm468, %v465, %v469
    %v471 = vld [vmem:[#allocation6] sm:$0xff]
    %v472 = vld [vmem:[#allocation6 + $0x8] sm:$0xff]
    %v473 = vld [vmem:[#allocation6 + $0x10] sm:$0xff]
    %v474 = vld [vmem:[#allocation6 + $0x18] sm:$0xff]
    %v475 = vld [vmem:[#allocation6 + $0x20] sm:$0xff]
    %v476 = vld [vmem:[#allocation6 + $0x28] sm:$0xff]
    %v477 = vld [vmem:[#allocation6 + $0x30] sm:$0xff]
    %v478 = vld [vmem:[#allocation6 + $0x38] sm:$0xff]
    %v479 = vld [vmem:[#allocation6 + $0x40] sm:$0xff]
    %v480 = vld [vmem:[#allocation6 + $0x48] sm:$0xff]
    %v481 = vld [vmem:[#allocation6 + $0x50] sm:$0xff]
    %v482 = vld [vmem:[#allocation6 + $0x58] sm:$0xff]
    %v483 = vld [vmem:[#allocation6 + $0x60] sm:$0xff]
    %v484 = vld [vmem:[#allocation6 + $0x68] sm:$0xff]
    %v485 = vld [vmem:[#allocation6 + $0x70] sm:$0xff]
    %v486 = vld [vmem:[#allocation6 + $0x78] sm:$0xff]
    %487 = vmatprep.subr.mxu0 0.0
    %488 = vmatpush1.msra.mxu0 %v471
    %489 = vmatprep.subr.mxu0 0.0
    %490 = vmatpush1.msra.mxu0 %v472
    %491 = vmatprep.subr.mxu0 0.0
    %492 = vmatpush1.msra.mxu0 %v473
    %493 = vmatprep.subr.mxu0 0.0
    %494 = vmatpush1.msra.mxu0 %v474
    %495 = vmatprep.subr.mxu0 0.0
    %496 = vmatpush1.msra.mxu0 %v475
    %497 = vmatprep.subr.mxu0 0.0
    %498 = vmatpush1.msra.mxu0 %v476
    %499 = vmatprep.subr.mxu0 0.0
    %500 = vmatpush1.msra.mxu0 %v477
    %501 = vmatprep.subr.mxu0 0.0
    %502 = vmatpush1.msra.mxu0 %v478
    %503 = vmatprep.subr.mxu0 0.0
    %504 = vmatpush1.msra.mxu0 %v479
    %505 = vmatprep.subr.mxu0 0.0
    %506 = vmatpush1.msra.mxu0 %v480
    %507 = vmatprep.subr.mxu0 0.0
    %508 = vmatpush1.msra.mxu0 %v481
    %509 = vmatprep.subr.mxu0 0.0
    %510 = vmatpush1.msra.mxu0 %v482
    %511 = vmatprep.subr.mxu0 0.0
    %512 = vmatpush1.msra.mxu0 %v483
    %513 = vmatprep.subr.mxu0 0.0
    %514 = vmatpush1.msra.mxu0 %v484
    %515 = vmatprep.subr.mxu0 0.0
    %516 = vmatpush1.msra.mxu0 %v485
    %517 = vmatprep.subr.mxu0 0.0
    %518 = vmatpush1.msra.mxu0 %v486
    %519 = vmatprep.subr.mxu0 0.0
    %520 = vmatpush1.msra.mxu0 0.0
    %521 = vmatprep.subr.mxu0 0.0
    %522 = vmatpush1.msra.mxu0 0.0
    %523 = vmatprep.subr.mxu0 0.0
    %524 = vmatpush1.msra.mxu0 0.0
    %525 = vmatprep.subr.mxu0 0.0
    %526 = vmatpush1.msra.mxu0 0.0
    %527 = vmatprep.subr.mxu0 0.0
    %528 = vmatpush1.msra.mxu0 0.0
    %529 = vmatprep.subr.mxu0 0.0
    %530 = vmatpush1.msra.mxu0 0.0
    %531 = vmatprep.subr.mxu0 0.0
    %532 = vmatpush1.msra.mxu0 0.0
    %533 = vmatprep.subr.mxu0 0.0
    %534 = vmatpush1.msra.mxu0 0.0
    %535 = vmatprep.subr.mxu0 0.0
    %536 = vmatpush1.msra.mxu0 0.0
    %537 = vmatprep.subr.mxu0 0.0
    %538 = vmatpush1.msra.mxu0 0.0
    %539 = vmatprep.subr.mxu0 0.0
    %540 = vmatpush1.msra.mxu0 0.0
    %541 = vmatprep.subr.mxu0 0.0
    %542 = vmatpush1.msra.mxu0 0.0
    %543 = vmatprep.subr.mxu0 0.0
    %544 = vmatpush1.msra.mxu0 0.0
    %545 = vmatprep.subr.mxu0 0.0
    %546 = vmatpush1.msra.mxu0 0.0
    %547 = vmatprep.subr.mxu0 0.0
    %548 = vmatpush1.msra.mxu0 0.0
    %549 = vmatprep.subr.mxu0 0.0
    %550 = vmatpush1.msra.mxu0 0.0
    %551 = vmatprep.mubr.f32.mxu0 0.0
    %552 = vmatmul.mubr.f32.gmra.mrb[0].mxu0 %v470
    %v553 = vpop.f32.mrb[0].mxu0
    %v554 = vadd.f32 0.0, %v553
    %v555 = vpop.f32.mrb[0].mxu0
    %556 = vdwg.mxu0
    %v557 = vtanh.pop %v554
    %v558 = vld [vmem:[%s8] sm:$0x1]
    %v560 = vlaneseq
    %v561 = vshrl.u32 %v560, 7
    %v562 = vsub.s32 0, %v561
    %v563 = vrot.slane %v558, %v562
    %v565 = vmul.f32 %v557, %v563
    %v566 = vld [vmem:[%s9] sm:$0x1]
    %v568 = vlaneseq
    %v569 = vshrl.u32 %v568, 7
    %v570 = vsub.s32 0, %v569
    %v571 = vrot.slane %v566, %v570
    %v573 = vadd.f32 %v565, %v571
    %574 = vst [vmem:[%s10] sm:$0xff] %v573
    // Predicated region
    $region54: #{fine_matching_feat_reg_cls.1} parent=1 // pred_check
      _
    $region55: #{fine_matching_feat_reg_cls.1} parent=1 // pred_check_branch
      %576 = sbr.rel (0) target = $region57
    $region56: #{fine_matching_feat_reg_cls.1} parent=1 // pred_region
      _
    $region57: #{fine_matching_feat_reg_cls.1} parent=1 // pred_fallthru
      _
    // Predicated region
    $region58: #{fine_matching_feat_reg_cls.1} parent=1 // pred_check
      _
    $region59: #{fine_matching_feat_reg_cls.1} parent=1 // pred_check_branch
      %578 = sbr.rel (0) target = $region61
    $region60: #{fine_matching_feat_reg_cls.1} parent=1 // pred_region
      _
    $region61: #{fine_matching_feat_reg_cls.1} parent=1 // pred_fallthru
      _
    %579 = vsyncpa [#allocation3], 1
    %580 = vsyncpa [#allocation5], 1

</llo_original>
